<compile_context>
chip_gen: v6e
topology: v6e:2x2x1
jax: 0.10.0
libtpu: 0.0.40
codegen_flags: <defaults>
</compile_context>

<pallas_src>
import jax
import jax.numpy as jnp
from jax.experimental import pallas as pl
from jax.experimental.pallas import tpu as pltpu

EPS = 1e-6

_TARGET_BLOCK_BYTES = 8 * 1024 * 1024   # per input buffer (double-buffered)
_MAX_FULL_HW = 16384                    # keep full spatial extent in one block up to here
_HW_CHUNK = 4096                        # lane chunk target when HW is larger
_MAX_TILE_ROWS = 2048                   # caps scratch at 5 * 2048 * 128 * 4 = 5 MiB


def _cdiv(a, b):
    return -(-a // b)


def _round_up(a, b):
    return _cdiv(a, b) * b


def _make_kernel(hw, hw_chunk, num_hw_chunks):
    """hw_chunk is a multiple of 128; only the last chunk may be partial."""
    inv_hw = 1.0 / float(hw)
    full_groups = hw_chunk // 128                 # 128-lane groups in a dense chunk
    last = num_hw_chunks - 1
    rem = hw - last * hw_chunk                    # valid lanes in the last chunk (1..hw_chunk)
    last_full = rem // 128
    last_tail = rem % 128                         # 0 => last chunk needs no lane mask
    last_is_dense = (last_full == full_groups) and (last_tail == 0)

    def _accum(x_ref, n_full, tail, sum_p, max_p, s2_p, s3_p, s4_p):
        # Accumulate (tile_rows, 128) lane partials over `n_full` dense groups plus an
        # optional masked tail group.  Group counts are static; groups past the valid
        # extent are never loaded.  Pure VALU; the lane reduce is deferred to finalize.
        # TODO(synk): for bf16 inputs the clamp/x2/x3/x4 could stay in packed bf16 on
        # v6e/v7x and only widen to f32 for the accumulating adds.
        for j in range(n_full):
            xg = x_ref[:, pl.ds(j * 128, 128)].astype(jnp.float32)
            sum_p = sum_p + xg
            max_p = jnp.maximum(max_p, xg)
            xc = jnp.maximum(xg, EPS)             # clamp(min=eps)
            x2 = xc * xc                          # explicit muls (VPU), not pow (EUP)
            s2_p = s2_p + x2
            s3_p = s3_p + x2 * xc
            s4_p = s4_p + x2 * x2
        if tail:
            xg = x_ref[:, pl.ds(n_full * 128, 128)].astype(jnp.float32)
            lane = jax.lax.broadcasted_iota(jnp.int32, xg.shape, 1)
            valid = lane < tail
            sum_p = sum_p + jnp.where(valid, xg, 0.0)
            max_p = jnp.maximum(max_p, jnp.where(valid, xg, -jnp.inf))
            xc = jnp.where(valid, jnp.maximum(xg, EPS), 0.0)
            x2 = xc * xc
            s2_p = s2_p + x2
            s3_p = s3_p + x2 * xc
            s4_p = s4_p + x2 * x2
        return sum_p, max_p, s2_p, s3_p, s4_p

    def kernel(x_ref, o_ref, sum_ref, max_ref, s2_ref, s3_ref, s4_ref):
        k = pl.program_id(1)

        @pl.when(k == 0)
        def _init():
            sum_ref[...] = jnp.zeros_like(sum_ref)
            max_ref[...] = jnp.full_like(max_ref, -jnp.inf)
            s2_ref[...] = jnp.zeros_like(s2_ref)
            s3_ref[...] = jnp.zeros_like(s3_ref)
            s4_ref[...] = jnp.zeros_like(s4_ref)

        def _run(n_full, tail):
            s, m, s2, s3, s4 = _accum(
                x_ref, n_full, tail,
                sum_ref[...], max_ref[...], s2_ref[...], s3_ref[...], s4_ref[...])
            sum_ref[...] = s
            max_ref[...] = m
            s2_ref[...] = s2
            s3_ref[...] = s3
            s4_ref[...] = s4

        if num_hw_chunks == 1:
            _run(last_full, last_tail)            # single (possibly lane-padded) chunk
        elif last_is_dense:
            _run(full_groups, 0)                  # every chunk is dense
        else:
            # Mask/truncation only on the last chunk; all other chunks stay dense.
            @pl.when(k != last)
            def _dense():
                _run(full_groups, 0)

            @pl.when(k == last)
            def _masked():
                _run(last_full, last_tail)

        @pl.when(k == last)
        def _finalize():
            mean = jnp.sum(sum_ref[...], axis=-1, keepdims=True) * inv_hw
            mx = jnp.max(max_ref[...], axis=-1, keepdims=True)
            gem2 = jnp.sqrt(jnp.sum(s2_ref[...], axis=-1, keepdims=True) * inv_hw)
            gem3 = (jnp.sum(s3_ref[...], axis=-1, keepdims=True) * inv_hw) ** (1.0 / 3.0)
            gem4 = jnp.sqrt(jnp.sqrt(jnp.sum(s4_ref[...], axis=-1, keepdims=True) * inv_hw))
            # (tile_rows, 5) store: output bytes are negligible vs the input stream.
            o_ref[...] = jnp.concatenate(
                [mean, mx, gem2, gem3, gem4], axis=-1
            ).astype(o_ref.dtype)

    return kernel


def avg_max_pool(x, output_size=1, *, tile_rows=None, hw_chunk=None):
    """x: (N, C, H, W) -> (N, 5*C, 1, 1); matches AvgMaxPool.forward for output_size=1."""
    # TODO(synk): only global pooling (output_size=1) is implemented.
    assert output_size == 1, "kernel implements global (output_size=1) pooling"
    N, C, H, W = x.shape
    NC, HW = N * C, H * W
    xf = x.reshape(NC, HW)
    itemsize = jnp.dtype(x.dtype).itemsize
    row_align = 8 * max(1, 4 // itemsize)          # 8 f32 / 16 bf16 / 32 int8-fp8

    # ---- spatial chunking policy (block lane width always a multiple of 128) ----
    if hw_chunk is None:
        if HW <= _MAX_FULL_HW:
            hw_chunk = _round_up(HW, 128)          # one full-extent chunk; no accumulation axis work
        else:
            n_chunks = _cdiv(HW, _HW_CHUNK)
            hw_chunk = _round_up(_cdiv(HW, n_chunks), 128)   # balanced chunk fill
    else:
        hw_chunk = min(_round_up(int(hw_chunk), 128), _round_up(HW, 128))
    num_hw_chunks = _cdiv(HW, hw_chunk)

    # ---- row tiling: ~8 MiB blocks, dtype-packed rows, >=2 tiles for v7x megacore ----
    if tile_rows is None:
        rows_budget = _TARGET_BLOCK_BYTES // (hw_chunk * itemsize)
        rows_budget = max(row_align, (rows_budget // row_align) * row_align)
        rows_budget = min(rows_budget, _MAX_TILE_ROWS)
        if NC <= row_align:
            tile_rows = NC                          # cannot split below sublane packing
        else:
            half = _round_up(_cdiv(NC, 2), row_align)   # guarantees >= 2 row tiles
            tile_rows = min(rows_budget, half)
    else:
        tile_rows = int(tile_rows)
    num_row_tiles = _cdiv(NC, tile_rows)

    # ---- VMEM budget: 2x input block + scratch + slack, clamped to device VMEM ----
    in_block_bytes = tile_rows * hw_chunk * itemsize
    scratch_bytes = 5 * tile_rows * 128 * 4
    want = 2 * in_block_bytes + scratch_bytes + (8 << 20)
    try:
        phys = int(pltpu.get_tpu_info().vmem_capacity_bytes)
    except Exception:
        phys = 64 * 1024 * 1024                     # conservative (v7x-sized) fallback
    cap = max(32 * 1024 * 1024, phys - 16 * 1024 * 1024)
    vmem_limit_bytes = int(min(max(32 * 1024 * 1024, want), cap))

    out = pl.pallas_call(
        _make_kernel(HW, hw_chunk, num_hw_chunks),
        out_shape=jax.ShapeDtypeStruct((NC, 5), x.dtype),
        grid_spec=pltpu.PrefetchScalarGridSpec(
            num_scalar_prefetch=0,
            grid=(num_row_tiles, num_hw_chunks),
            in_specs=[pl.BlockSpec((tile_rows, hw_chunk), lambda i, k: (i, k))],
            out_specs=pl.BlockSpec((tile_rows, 5), lambda i, k: (i, 0)),
            scratch_shapes=[pltpu.VMEM((tile_rows, 128), jnp.float32) for _ in range(5)],
        ),
        compiler_params=pltpu.CompilerParams(
            dimension_semantics=("parallel", "arbitrary"),
            vmem_limit_bytes=vmem_limit_bytes,
        ),
    )(xf)

    # (NC, 5) -> (N, C, 5) -> (N, 5, C) -> (N, 5C, 1, 1); channel order matches
    # torch.cat: [avg(C), max(C), gem_p2(C), gem_p3(C), gem_p4(C)].
    return out.reshape(N, C, 5).transpose(0, 2, 1).reshape(N, 5 * C, 1, 1)


def _reference(x):
    mean = jnp.mean(x, axis=(2, 3), keepdims=True)
    mx = jnp.max(x, axis=(2, 3), keepdims=True)
    parts = [mean, mx]
    xc = jnp.clip(x, EPS, None)
    for p in (2.0, 3.0, 4.0):
        parts.append(jnp.mean(xc ** p, axis=(2, 3), keepdims=True) ** (1.0 / p))
    return jnp.concatenate(parts, axis=1)


if __name__ == "__main__":
    key = jax.random.PRNGKey(0)
    cases = [
        ((2, 4, 16, 16), {}),                                  # primary small case, single dense block
        ((2, 3, 7, 7), {}),                                    # HW=49: lane-padded single chunk (masked tail)
        ((2, 4, 72, 72), {}),                                  # HW=5184: full-extent block, masked tail group
        ((2, 32, 24, 24), dict(tile_rows=16, hw_chunk=128)),   # multi row tiles + chunked + masked last chunk
    ]
    for idx, (shape, kw) in enumerate(cases):
        key, sub = jax.random.split(key)
        x = jax.random.normal(sub, shape, dtype=jnp.float32)
        y = jax.block_until_ready(avg_max_pool(x, **kw))
        y_ref = _reference(x)
        n, c = shape[0], shape[1]
        assert y.shape == (n, 5 * c, 1, 1), (idx, y.shape)
        assert jnp.allclose(y, y_ref, atol=1e-4, rtol=1e-4), f"mismatch vs reference (case {idx})"
    print("KERNEL_OK")
</pallas_src>

<mosaic_0001>
module attributes {stable_mosaic.version = 11 : i64} {
  func.func @kernel(%arg0: i32, %arg1: i32, %arg2: memref<8x256xf32, #tpu.memory_space<vmem>>, %arg3: memref<8x5xf32, #tpu.memory_space<vmem>>, %arg4: memref<8x128xf32, #tpu.memory_space<vmem>>, %arg5: memref<8x128xf32, #tpu.memory_space<vmem>>, %arg6: memref<8x128xf32, #tpu.memory_space<vmem>>, %arg7: memref<8x128xf32, #tpu.memory_space<vmem>>, %arg8: memref<8x128xf32, #tpu.memory_space<vmem>>) attributes {dimension_semantics = [#tpu.dimension_semantics<parallel>, #tpu.dimension_semantics<arbitrary>], iteration_bounds = array<i64: 1, 1>, scalar_prefetch = 0 : i64, scratch_operands = 5 : i64, tpu.core_type = #tpu.core_type<tc>, window_params = [{transform_indices = @transform_0, window_bounds = array<i64: 8, 256>}, {transform_indices = @transform_1, window_bounds = array<i64: 8, 5>}]} {
    %c0_i32 = arith.constant 0 : i32
    %0 = arith.cmpi eq, %arg1, %c0_i32 : i32
    %1 = arith.extui %0 : i1 to i32
    %c0_i32_0 = arith.constant 0 : i32
    %2 = arith.cmpi ne, %1, %c0_i32_0 : i32
    scf.if %2 {
      %cst_26 = arith.constant 0.000000e+00 : f32
      %38 = vector.broadcast %cst_26 : f32 to vector<8x128xf32>
      %c0_27 = arith.constant 0 : index
      %c0_28 = arith.constant 0 : index
      %39 = vector.load %arg4[%c0_27, %c0_28] : memref<8x128xf32, #tpu.memory_space<vmem>>, vector<8x128xf32>
      tpu.vector_store %arg4[%c0_27, %c0_28], %38 {strides = array<i32>} : memref<8x128xf32, #tpu.memory_space<vmem>>, vector<8x128xf32>,
      %cst_29 = arith.constant 0xFF800000 : f32
      %40 = vector.broadcast %cst_29 : f32 to vector<8x128xf32>
      %c0_30 = arith.constant 0 : index
      %c0_31 = arith.constant 0 : index
      %41 = vector.load %arg5[%c0_30, %c0_31] : memref<8x128xf32, #tpu.memory_space<vmem>>, vector<8x128xf32>
      tpu.vector_store %arg5[%c0_30, %c0_31], %40 {strides = array<i32>} : memref<8x128xf32, #tpu.memory_space<vmem>>, vector<8x128xf32>,
      %cst_32 = arith.constant 0.000000e+00 : f32
      %42 = vector.broadcast %cst_32 : f32 to vector<8x128xf32>
      %c0_33 = arith.constant 0 : index
      %c0_34 = arith.constant 0 : index
      %43 = vector.load %arg6[%c0_33, %c0_34] : memref<8x128xf32, #tpu.memory_space<vmem>>, vector<8x128xf32>
      tpu.vector_store %arg6[%c0_33, %c0_34], %42 {strides = array<i32>} : memref<8x128xf32, #tpu.memory_space<vmem>>, vector<8x128xf32>,
      %cst_35 = arith.constant 0.000000e+00 : f32
      %44 = vector.broadcast %cst_35 : f32 to vector<8x128xf32>
      %c0_36 = arith.constant 0 : index
      %c0_37 = arith.constant 0 : index
      %45 = vector.load %arg7[%c0_36, %c0_37] : memref<8x128xf32, #tpu.memory_space<vmem>>, vector<8x128xf32>
      tpu.vector_store %arg7[%c0_36, %c0_37], %44 {strides = array<i32>} : memref<8x128xf32, #tpu.memory_space<vmem>>, vector<8x128xf32>,
      %cst_38 = arith.constant 0.000000e+00 : f32
      %46 = vector.broadcast %cst_38 : f32 to vector<8x128xf32>
      %c0_39 = arith.constant 0 : index
      %c0_40 = arith.constant 0 : index
      %47 = vector.load %arg8[%c0_39, %c0_40] : memref<8x128xf32, #tpu.memory_space<vmem>>, vector<8x128xf32>
      tpu.vector_store %arg8[%c0_39, %c0_40], %46 {strides = array<i32>} : memref<8x128xf32, #tpu.memory_space<vmem>>, vector<8x128xf32>,
    } else {
    }
    %c0 = arith.constant 0 : index
    %c0_1 = arith.constant 0 : index
    %3 = vector.load %arg4[%c0, %c0_1] : memref<8x128xf32, #tpu.memory_space<vmem>>, vector<8x128xf32>
    %c0_2 = arith.constant 0 : index
    %c0_3 = arith.constant 0 : index
    %4 = vector.load %arg5[%c0_2, %c0_3] : memref<8x128xf32, #tpu.memory_space<vmem>>, vector<8x128xf32>
    %c0_4 = arith.constant 0 : index
    %c0_5 = arith.constant 0 : index
    %5 = vector.load %arg6[%c0_4, %c0_5] : memref<8x128xf32, #tpu.memory_space<vmem>>, vector<8x128xf32>
    %c0_6 = arith.constant 0 : index
    %c0_7 = arith.constant 0 : index
    %6 = vector.load %arg7[%c0_6, %c0_7] : memref<8x128xf32, #tpu.memory_space<vmem>>, vector<8x128xf32>
    %c0_8 = arith.constant 0 : index
    %c0_9 = arith.constant 0 : index
    %7 = vector.load %arg8[%c0_8, %c0_9] : memref<8x128xf32, #tpu.memory_space<vmem>>, vector<8x128xf32>
    %c0_10 = arith.constant 0 : index
    %c0_11 = arith.constant 0 : index
    %8 = vector.load %arg2[%c0_10, %c0_11] : memref<8x256xf32, #tpu.memory_space<vmem>>, vector<8x128xf32>
    %9 = arith.addf %3, %8 : vector<8x128xf32>
    %10 = arith.maximumf %4, %8 : vector<8x128xf32>
    %cst = arith.constant 9.99999997E-7 : f32
    %11 = vector.broadcast %cst : f32 to vector<8x128xf32>
    %12 = arith.maximumf %8, %11 : vector<8x128xf32>
    %13 = arith.mulf %12, %12 : vector<8x128xf32>
    %14 = arith.addf %5, %13 : vector<8x128xf32>
    %15 = arith.mulf %13, %12 : vector<8x128xf32>
    %16 = arith.addf %6, %15 : vector<8x128xf32>
    %17 = arith.mulf %13, %13 : vector<8x128xf32>
    %18 = arith.addf %7, %17 : vector<8x128xf32>
    %c0_12 = arith.constant 0 : index
    %c128 = arith.constant 128 : index
    %19 = vector.load %arg2[%c0_12, %c128] : memref<8x256xf32, #tpu.memory_space<vmem>>, vector<8x128xf32>
    %20 = arith.addf %9, %19 : vector<8x128xf32>
    %21 = arith.maximumf %10, %19 : vector<8x128xf32>
    %cst_13 = arith.constant 9.99999997E-7 : f32
    %22 = vector.broadcast %cst_13 : f32 to vector<8x128xf32>
    %23 = arith.maximumf %19, %22 : vector<8x128xf32>
    %24 = arith.mulf %23, %23 : vector<8x128xf32>
    %25 = arith.addf %14, %24 : vector<8x128xf32>
    %26 = arith.mulf %24, %23 : vector<8x128xf32>
    %27 = arith.addf %16, %26 : vector<8x128xf32>
    %28 = arith.mulf %24, %24 : vector<8x128xf32>
    %29 = arith.addf %18, %28 : vector<8x128xf32>
    %c0_14 = arith.constant 0 : index
    %c0_15 = arith.constant 0 : index
    %30 = vector.load %arg4[%c0_14, %c0_15] : memref<8x128xf32, #tpu.memory_space<vmem>>, vector<8x128xf32>
    tpu.vector_store %arg4[%c0_14, %c0_15], %20 {strides = array<i32>} : memref<8x128xf32, #tpu.memory_space<vmem>>, vector<8x128xf32>,
    %c0_16 = arith.constant 0 : index
    %c0_17 = arith.constant 0 : index
    %31 = vector.load %arg5[%c0_16, %c0_17] : memref<8x128xf32, #tpu.memory_space<vmem>>, vector<8x128xf32>
    tpu.vector_store %arg5[%c0_16, %c0_17], %21 {strides = array<i32>} : memref<8x128xf32, #tpu.memory_space<vmem>>, vector<8x128xf32>,
    %c0_18 = arith.constant 0 : index
    %c0_19 = arith.constant 0 : index
    %32 = vector.load %arg6[%c0_18, %c0_19] : memref<8x128xf32, #tpu.memory_space<vmem>>, vector<8x128xf32>
    tpu.vector_store %arg6[%c0_18, %c0_19], %25 {strides = array<i32>} : memref<8x128xf32, #tpu.memory_space<vmem>>, vector<8x128xf32>,
    %c0_20 = arith.constant 0 : index
    %c0_21 = arith.constant 0 : index
    %33 = vector.load %arg7[%c0_20, %c0_21] : memref<8x128xf32, #tpu.memory_space<vmem>>, vector<8x128xf32>
    tpu.vector_store %arg7[%c0_20, %c0_21], %27 {strides = array<i32>} : memref<8x128xf32, #tpu.memory_space<vmem>>, vector<8x128xf32>,
    %c0_22 = arith.constant 0 : index
    %c0_23 = arith.constant 0 : index
    %34 = vector.load %arg8[%c0_22, %c0_23] : memref<8x128xf32, #tpu.memory_space<vmem>>, vector<8x128xf32>
    tpu.vector_store %arg8[%c0_22, %c0_23], %29 {strides = array<i32>} : memref<8x128xf32, #tpu.memory_space<vmem>>, vector<8x128xf32>,
    %c0_i32_24 = arith.constant 0 : i32
    %35 = arith.cmpi eq, %arg1, %c0_i32_24 : i32
    %36 = arith.extui %35 : i1 to i32
    %c0_i32_25 = arith.constant 0 : i32
    %37 = arith.cmpi ne, %36, %c0_i32_25 : i32
    scf.if %37 {
      %c0_26 = arith.constant 0 : index
      %c0_27 = arith.constant 0 : index
      %38 = vector.load %arg4[%c0_26, %c0_27] : memref<8x128xf32, #tpu.memory_space<vmem>>, vector<8x128xf32>
      %cst_28 = arith.constant dense<0.000000e+00> : vector<8xf32>
      %39 = vector.multi_reduction <add>, %38, %cst_28 [1] : vector<8x128xf32> to vector<8xf32>
      %40 = vector.shape_cast %39 : vector<8xf32> to vector<8x1xf32>
      %cst_29 = arith.constant 3.906250e-03 : f32
      %41 = vector.broadcast %cst_29 : f32 to vector<8x1xf32>
      %42 = arith.mulf %40, %41 : vector<8x1xf32>
      %c0_30 = arith.constant 0 : index
      %c0_31 = arith.constant 0 : index
      %43 = vector.load %arg5[%c0_30, %c0_31] : memref<8x128xf32, #tpu.memory_space<vmem>>, vector<8x128xf32>
      %cst_32 = arith.constant dense<0xFF800000> : vector<8xf32>
      %44 = vector.multi_reduction <maximumf>, %43, %cst_32 [1] : vector<8x128xf32> to vector<8xf32>
      %45 = vector.shape_cast %44 : vector<8xf32> to vector<8x1xf32>
      %c0_33 = arith.constant 0 : index
      %c0_34 = arith.constant 0 : index
      %46 = vector.load %arg6[%c0_33, %c0_34] : memref<8x128xf32, #tpu.memory_space<vmem>>, vector<8x128xf32>
      %cst_35 = arith.constant dense<0.000000e+00> : vector<8xf32>
      %47 = vector.multi_reduction <add>, %46, %cst_35 [1] : vector<8x128xf32> to vector<8xf32>
      %48 = vector.shape_cast %47 : vector<8xf32> to vector<8x1xf32>
      %cst_36 = arith.constant 3.906250e-03 : f32
      %49 = vector.broadcast %cst_36 : f32 to vector<8x1xf32>
      %50 = arith.mulf %48, %49 : vector<8x1xf32>
      %51 = math.sqrt %50 : vector<8x1xf32>
      %c0_37 = arith.constant 0 : index
      %c0_38 = arith.constant 0 : index
      %52 = vector.load %arg7[%c0_37, %c0_38] : memref<8x128xf32, #tpu.memory_space<vmem>>, vector<8x128xf32>
      %cst_39 = arith.constant dense<0.000000e+00> : vector<8xf32>
      %53 = vector.multi_reduction <add>, %52, %cst_39 [1] : vector<8x128xf32> to vector<8xf32>
      %54 = vector.shape_cast %53 : vector<8xf32> to vector<8x1xf32>
      %cst_40 = arith.constant 3.906250e-03 : f32
      %55 = vector.broadcast %cst_40 : f32 to vector<8x1xf32>
      %56 = arith.mulf %54, %55 : vector<8x1xf32>
      %cst_41 = arith.constant 0.333333343 : f32
      %57 = vector.broadcast %cst_41 : f32 to vector<8x1xf32>
      %58 = math.powf %56, %57 : vector<8x1xf32>
      %c0_42 = arith.constant 0 : index
      %c0_43 = arith.constant 0 : index
      %59 = vector.load %arg8[%c0_42, %c0_43] : memref<8x128xf32, #tpu.memory_space<vmem>>, vector<8x128xf32>
      %cst_44 = arith.constant dense<0.000000e+00> : vector<8xf32>
      %60 = vector.multi_reduction <add>, %59, %cst_44 [1] : vector<8x128xf32> to vector<8xf32>
      %61 = vector.shape_cast %60 : vector<8xf32> to vector<8x1xf32>
      %cst_45 = arith.constant 3.906250e-03 : f32
      %62 = vector.broadcast %cst_45 : f32 to vector<8x1xf32>
      %63 = arith.mulf %61, %62 : vector<8x1xf32>
      %64 = math.sqrt %63 : vector<8x1xf32>
      %65 = math.sqrt %64 : vector<8x1xf32>
      %66 = tpu.concatenate %42, %45, %51, %58, %65 in 1 : vector<8x1xf32>, vector<8x1xf32>, vector<8x1xf32>, vector<8x1xf32>, vector<8x1xf32> -> vector<8x5xf32>
      %c0_46 = arith.constant 0 : index
      %c0_47 = arith.constant 0 : index
      %67 = vector.load %arg3[%c0_46, %c0_47] : memref<8x5xf32, #tpu.memory_space<vmem>>, vector<8x5xf32>
      tpu.vector_store %arg3[%c0_46, %c0_47], %66 {strides = array<i32>} : memref<8x5xf32, #tpu.memory_space<vmem>>, vector<8x5xf32>,
    } else {
    }
    return
  }
  func.func @transform_0(%arg0: i32, %arg1: i32) -> (i32, i32) {
    %c0_i32 = arith.constant 0 : i32
    return %arg0, %arg1 : i32, i32
  }
  func.func @transform_1(%arg0: i32, %arg1: i32) -> (i32, i32) {
    %c0_i32 = arith.constant 0 : i32
    %c0_i32_0 = arith.constant 0 : i32
    return %arg0, %c0_i32 : i32, i32
  }
}

</mosaic_0001>

<llo_original>
// kernel: tpu_custom_call.1
$region0: #{tpu_custom_call.1}
  #allocation0 [shape = 'u32[]', space=smem, size = 0x4, offset = 0x4, fixed_abs, tag = 'smem constant byte address 0x4 - core index']
  #allocation1 [shape = 'u32[144,128]{1,0:T(1,128)}', space=vmem, size = 0x12000, scoped, tag = 'internal scratch']
  #allocation2 [shape = 'f32[8,128]{1,0:T(8,128)}', space=vmem, size = 0x1000, scoped, tag = 'scratch operand']
  #allocation3 [shape = 'f32[8,128]{1,0:T(8,128)}', space=vmem, size = 0x1000, scoped, tag = 'scratch operand']
  #allocation4 [shape = 'f32[8,128]{1,0:T(8,128)}', space=vmem, size = 0x1000, scoped, tag = 'scratch operand']
  #allocation5 [shape = 'f32[8,128]{1,0:T(8,128)}', space=vmem, size = 0x1000, scoped, tag = 'scratch operand']
  #allocation6 [shape = 'f32[8,128]{1,0:T(8,128)}', space=vmem, size = 0x1000, scoped, tag = 'scratch operand']
  %s0 = inlined_call_operand.hbm [shape: f32[8,256], index: 0, kind: input, shape index: {}]
  %s1 = inlined_call_operand.hbm [shape: f32[8,5], index: 1, kind: output, shape index: {}]
  %s2 = sld [smem:[#allocation0]]
  $region26: #{tpu_custom_call.1} parent=0
    _
  %s4 = ssub.s32 1, %s2
  %s5 = scalar_select 0, %s4, %s2
  $region1: #{tpu_custom_call.1} parent=0
    #allocation7 [shape = 'u8[8192]{0}', space=vmem, size = 0x2000, scoped, tag = 'input window, operand 0, single buffered']
    #allocation8 [shape = 's32[1]{0}', space=sflag, size = 0x4, scoped, tag = 'scoped memory for tpu_custom_call.1']
    #allocation9 [shape = 's32[1]{0}', space=sflag, size = 0x4, scoped, tag = 'scoped memory for tpu_custom_call.1']
    #allocation10 [shape = 'u8[4096]{0}', space=vmem, size = 0x1000, scoped, tag = 'output window, operand 0, single buffered']
    %6 = vsyncpa [#allocation8], 0
    %7 = vsyncpa [#allocation9], 0
    // Predicated region
    $region2: #{tpu_custom_call.1} parent=1 // pred_check
      _
    $region3: #{tpu_custom_call.1} parent=1 // pred_check_branch
      %9 = sbr.rel (0) target = $region5
    $region4: #{tpu_custom_call.1} parent=1 // pred_region
      %s11 = ssub.s32 256, 256
      %12 = vsyncadd [#allocation8], %s11
      %s14 = sshll.u32 [#allocation7], 4
      %s15 = int_to_ptr.vmem [resolvable:$true] %s14
      %17 = dma.hbm_to_vmem [thread:$0]  %s0, 256, %s15, [#allocation8]
    $region5: #{tpu_custom_call.1} parent=1 // pred_fallthru
      _
    // Predicated region
    $region6: #{tpu_custom_call.1} parent=1 // pred_check
      _
    $region7: #{tpu_custom_call.1} parent=1 // pred_check_branch
      %19 = sbr.rel (0) target = $region9
    $region8: #{tpu_custom_call.1} parent=1 // pred_region
      %20 = dma.done [#allocation8], 256
    $region9: #{tpu_custom_call.1} parent=1 // pred_fallthru
      _
    %p21 = scmp.eq.s32.totalorder 0, 0
    // Predicated region
    $region10: #{tpu_custom_call.1} parent=1 // pred_check
      %p22 = pneg %p21
    $region11: #{tpu_custom_call.1} parent=1 // pred_check_branch
      %24 = sbr.rel (%p22) target = $region13
    $region12: #{tpu_custom_call.1} parent=1 // pred_region
      %25 = vst [vmem:[#allocation2] sm:$0xff] 0.0
      %26 = vst [vmem:[#allocation3] sm:$0xff] -inf
      %27 = vst [vmem:[#allocation4] sm:$0xff] 0.0
      %28 = vst [vmem:[#allocation5] sm:$0xff] 0.0
      %29 = vst [vmem:[#allocation6] sm:$0xff] 0.0
    $region13: #{tpu_custom_call.1} parent=1 // pred_fallthru
      _
    %v30 = vld [vmem:[#allocation2] sm:$0xff]
    %v31 = vld [vmem:[#allocation3] sm:$0xff]
    %v32 = vld [vmem:[#allocation4] sm:$0xff]
    %v33 = vld [vmem:[#allocation5] sm:$0xff]
    %v34 = vld [vmem:[#allocation6] sm:$0xff]
    %v35 = vld [vmem:[#allocation7] sm:$0xff]
    %v36 = vadd.f32 %v30, %v35
    %v37 = vmax.f32 %v31, %v35
    %v38 = vmax.f32 %v35, 1e-06
    %v39 = vmul.f32 %v38, %v38
    %v40 = vadd.f32 %v32, %v39
    %v41 = vmul.f32 %v39, %v38
    %v42 = vadd.f32 %v33, %v41
    %v43 = vmul.f32 %v39, %v39
    %v44 = vadd.f32 %v34, %v43
    %v45 = vld [vmem:[#allocation7 + $0x8] sm:$0xff]
    %v46 = vadd.f32 %v36, %v45
    %v47 = vmax.f32 %v37, %v45
    %v48 = vmax.f32 %v45, 1e-06
    %v49 = vmul.f32 %v48, %v48
    %v50 = vadd.f32 %v40, %v49
    %v51 = vmul.f32 %v49, %v48
    %v52 = vadd.f32 %v42, %v51
    %v53 = vmul.f32 %v49, %v49
    %v54 = vadd.f32 %v44, %v53
    %55 = vst [vmem:[#allocation2] sm:$0xff] %v46
    %56 = vst [vmem:[#allocation3] sm:$0xff] %v47
    %57 = vst [vmem:[#allocation4] sm:$0xff] %v50
    %58 = vst [vmem:[#allocation5] sm:$0xff] %v52
    %59 = vst [vmem:[#allocation6] sm:$0xff] %v54
    // Predicated region
    $region14: #{tpu_custom_call.1} parent=1 // pred_check
      %p60 = pneg %p21
    $region15: #{tpu_custom_call.1} parent=1 // pred_check_branch
      %62 = sbr.rel (%p60) target = $region17
    $region16: #{tpu_custom_call.1} parent=1 // pred_region
      %v63 = vld [vmem:[#allocation2] sm:$0xff]
      %64 = vadd.xlane.f32.xlu0 %v63
      %v65 = vpop.xlane.xlu0 %64
      %v66 = vmul.f32 %v65, 0.00390625
      %v67 = vld [vmem:[#allocation3] sm:$0xff]
      %68 = vmax.xlane.f32.xlu0 %v67
      %v69 = vpop.xlane.xlu0 %68
      %v70 = vld [vmem:[#allocation4] sm:$0xff]
      %71 = vadd.xlane.f32.xlu0 %v70
      %v72 = vpop.xlane.xlu0 %71
      %v73 = vmul.f32 %v72, 0.00390625
      %v74 = vrsqrt.pop %v73
      %v75 = vmul.f32 %v73, %v74
      %vm76 = vcmp.eq.f32.partialorder %v73, inf
      %v77 = vsel %vm76, %v73, %v75
      %vm78 = vcmp.eq.f32.partialorder %v73, 0.0
      %v79 = vand.u32 %v73, 2147483648
      %v80 = vsel %vm78, %v79, %v77
      %v81 = vld [vmem:[#allocation5] sm:$0xff]
      %82 = vadd.xlane.f32.xlu0 %v81
      %v83 = vpop.xlane.xlu0 %82
      %v84 = vmul.f32 %v83, 0.00390625
      %v85 = vpow.f32 %v84, 0.33333334
      %v86 = vld [vmem:[#allocation6] sm:$0xff]
      %87 = vadd.xlane.f32.xlu0 %v86
      %v88 = vpop.xlane.xlu0 %87
      %v89 = vmul.f32 %v88, 0.00390625
      %v90 = vrsqrt.pop %v89
      %v91 = vmul.f32 %v89, %v90
      %vm92 = vcmp.eq.f32.partialorder %v89, inf
      %v93 = vsel %vm92, %v89, %v91
      %vm94 = vcmp.eq.f32.partialorder %v89, 0.0
      %v95 = vand.u32 %v89, 2147483648
      %v96 = vsel %vm94, %v95, %v93
      %v97 = vrsqrt.pop %v96
      %v98 = vmul.f32 %v96, %v97
      %vm99 = vcmp.eq.f32.partialorder %v96, inf
      %v100 = vsel %vm99, %v96, %v98
      %vm101 = vcmp.eq.f32.partialorder %v96, 0.0
      %v102 = vand.u32 %v96, 2147483648
      %v103 = vsel %vm101, %v102, %v100
      %vm104 = vcmask 7168
      %v105 = vsel %vm104, %v66, %v69
      %vm106 = vcmask 15360
      %v107 = vsel %vm106, %v105, %v80
      %vm108 = vcmask 23552
      %v109 = vsel %vm108, %v107, %v85
      %vm110 = vcmask 31744
      %v111 = vsel %vm110, %v109, %v103
      %vm112 = vcmask 39936
      %113 = vst.msk [vmem:[#allocation10] sm:$0xff] %vm112, %v111
    $region17: #{tpu_custom_call.1} parent=1 // pred_fallthru
      _
    // Predicated region
    $region18: #{tpu_custom_call.1} parent=1 // pred_check
      _
    $region19: #{tpu_custom_call.1} parent=1 // pred_check_branch
      %115 = sbr.rel (0) target = $region21
    $region20: #{tpu_custom_call.1} parent=1 // pred_region
      %s117 = ssub.s32 128, 128
      %118 = vsyncadd [#allocation9], %s117
      %s120 = sshll.u32 [#allocation10], 4
      %s121 = int_to_ptr.vmem [resolvable:$true] %s120
      %123 = dma.vmem_to_hbm [thread:$0]  %s121, 128, %s1, [#allocation9]
    $region21: #{tpu_custom_call.1} parent=1 // pred_fallthru
      _
    // Predicated region
    $region22: #{tpu_custom_call.1} parent=1 // pred_check
      _
    $region23: #{tpu_custom_call.1} parent=1 // pred_check_branch
      %125 = sbr.rel (0) target = $region25
    $region24: #{tpu_custom_call.1} parent=1 // pred_region
      %126 = dma.done [#allocation9], 128
    $region25: #{tpu_custom_call.1} parent=1 // pred_fallthru
      _
    %127 = vsyncpa [#allocation8], 1
    %128 = vsyncpa [#allocation9], 1

</llo_original>
